<compile_context>
chip_gen: v5e
topology: v5e:2x2
jax: 0.10.0
libtpu: 0.0.40
codegen_flags: <defaults>
</compile_context>

<pallas_src>
import functools

import jax
import jax.numpy as jnp
from jax.experimental import pallas as pl
from jax.experimental.pallas import tpu as pltpu


def _conv_relu_kernel(xcol_ref, w_ref, b_ref, o_ref, *, activate):
    # xcol_ref: (1, K, T)     im2col'd input tile, K = 9*C_in, T = pixel tile
    # w_ref:    (C_out, K)
    # b_ref:    (C_out, 1)    float32
    # o_ref:    (1, C_out, T) lane-dense output tile (NCHW pixel-major)
    acc = jnp.dot(w_ref[...], xcol_ref[0],
                  preferred_element_type=jnp.float32)   # (C_out, T), f32 acc
    acc = acc + b_ref[...]                              # lane broadcast of bias
    if activate:
        acc = jnp.maximum(acc, 0.0)
    o_ref[0] = acc.astype(o_ref.dtype)


def _choose_pixel_tile(num_pixels):
    """Largest multiple-of-128 divisor of num_pixels, capped so that (a) there
    are >= 2 pixel tiles when possible (pipeline depth) and (b) blocks stay
    VMEM-friendly on v7x (64 MiB)."""
    if num_pixels % 128 != 0:
        return num_pixels            # block == full array dim is always legal
    cap = min(max(num_pixels // 2, 128), 2048)
    best = 128
    t = 128
    while t <= cap:
        if num_pixels % t == 0:
            best = t
        t += 128
    return best


def conv_relu(x_nchw, w_oihw, bias, *, activate=True,
              compute_dtype=jnp.float32):
    """Forward of ConvRelu. x_nchw: (N, C_in, H, W). Returns NCHW."""
    N, C_in, H, W = x_nchw.shape
    C_out = w_oihw.shape[0]
    P = H * W
    K = 9 * C_in

    # --- im2col in the wrapper (stays NCHW / pixel-major the whole way; no
    # NHWC transpose anywhere).  XLA fuses the pad + shifted slices + concat.
    x_pad = jnp.pad(x_nchw, ((0, 0), (0, 0), (1, 1), (1, 1)))
    patches = []
    for ky in range(3):
        for kx in range(3):
            patches.append(
                x_pad[:, :, ky:ky + H, kx:kx + W].reshape(N, C_in, P))
    xcol = jnp.concatenate(patches, axis=1).astype(compute_dtype)  # (N, K, P)

    # OIHW -> (C_out, ky, kx, ci) -> (C_out, 9*C_in); matches xcol row order.
    wmat = jnp.transpose(w_oihw, (0, 2, 3, 1)).reshape(C_out, K)
    wmat = wmat.astype(compute_dtype)
    b2d = bias.reshape(C_out, 1).astype(jnp.float32)

    T = _choose_pixel_tile(P)
    grid = (N, P // T)

    # Explicit VMEM budget: double-buffered in/out blocks + resident weights.
    c_item = jnp.dtype(compute_dtype).itemsize
    o_item = jnp.dtype(x_nchw.dtype).itemsize
    need = (2 * (T * K * c_item + T * C_out * o_item)
            + K * C_out * c_item + C_out * 4)
    vmem_limit = int(max(32 * 1024 * 1024, need + (8 << 20)))

    kernel = functools.partial(_conv_relu_kernel, activate=activate)

    out = pl.pallas_call(
        kernel,
        out_shape=jax.ShapeDtypeStruct((N, C_out, P), x_nchw.dtype),
        grid_spec=pltpu.PrefetchScalarGridSpec(
            num_scalar_prefetch=0,
            grid=grid,
            in_specs=[
                pl.BlockSpec((1, K, T), lambda n, t: (n, 0, t)),
                pl.BlockSpec((C_out, K), lambda n, t: (0, 0)),
                pl.BlockSpec((C_out, 1), lambda n, t: (0, 0)),
            ],
            out_specs=pl.BlockSpec((1, C_out, T), lambda n, t: (n, 0, t)),
        ),
        compiler_params=pltpu.CompilerParams(
            dimension_semantics=("parallel", "parallel"),
            vmem_limit_bytes=vmem_limit),
    )(xcol, wmat, b2d)

    # (N, C_out, H*W) is already NCHW; just un-flatten the pixel axis.
    return out.reshape(N, C_out, H, W)


def _reference(x_nchw, w_oihw, bias, activate=True):
    out = jax.lax.conv_general_dilated(
        x_nchw, w_oihw, window_strides=(1, 1), padding=((1, 1), (1, 1)),
        dimension_numbers=("NCHW", "OIHW", "NCHW"))
    out = out + bias[None, :, None, None]
    if activate:
        out = jnp.maximum(out, 0.0)
    return out


if __name__ == "__main__":
    # Small shapes consistent with the module: batch=2, in=4, out=8, 16x16.
    N, C_in, C_out, H, W = 2, 4, 8, 16, 16

    key = jax.random.PRNGKey(0)
    kx, kw, kb = jax.random.split(key, 3)
    x = jax.random.normal(kx, (N, C_in, H, W), dtype=jnp.float32)
    # Deterministic init mimicking nn.Conv2d default (uniform +-1/sqrt(fan_in)).
    fan_in = C_in * 3 * 3
    bound = 1.0 / jnp.sqrt(fan_in)
    w = jax.random.uniform(kw, (C_out, C_in, 3, 3), jnp.float32, -bound, bound)
    b = jax.random.uniform(kb, (C_out,), jnp.float32, -bound, bound)
    # batch_norm=False (module default), activate=True.
    # TODO(synk): BatchNorm2d branch (batch_norm=True) not implemented; module
    # default leaves it off.

    ref = _reference(x, w, b, activate=True)

    # f32 compute path: preserves the PyTorch module numerics exactly.
    out = conv_relu(x, w, b, activate=True, compute_dtype=jnp.float32)
    out = jax.block_until_ready(out)
    assert out.shape == (N, C_out, H, W)
    assert jnp.allclose(out, ref, atol=1e-4, rtol=1e-4)

    # bf16 MXU path (v6e/v7x throughput), f32 accumulation: looser tolerance
    # because the inputs themselves are rounded to bf16.
    out_bf16 = conv_relu(x, w, b, activate=True, compute_dtype=jnp.bfloat16)
    out_bf16 = jax.block_until_ready(out_bf16)
    assert out_bf16.shape == (N, C_out, H, W)
    assert jnp.allclose(out_bf16, ref, atol=5e-2, rtol=5e-2)

    print("KERNEL_OK")
</pallas_src>

<mosaic_0001>
module attributes {stable_mosaic.version = 11 : i64} {
  func.func @_conv_relu_kernel(%arg0: i32, %arg1: i32, %arg2: memref<1x36x128xf32, #tpu.memory_space<vmem>>, %arg3: memref<8x36xf32, #tpu.memory_space<vmem>>, %arg4: memref<8x1xf32, #tpu.memory_space<vmem>>, %arg5: memref<1x8x128xf32, #tpu.memory_space<vmem>>) attributes {dimension_semantics = [#tpu.dimension_semantics<parallel>, #tpu.dimension_semantics<parallel>], iteration_bounds = array<i64: 2, 2>, scalar_prefetch = 0 : i64, scratch_operands = 0 : i64, tpu.core_type = #tpu.core_type<tc>, window_params = [{transform_indices = @transform_0, window_bounds = array<i64: 1, 36, 128>}, {pipeline_mode = #tpu.pipeline_mode<synchronous>, transform_indices = @transform_1, window_bounds = array<i64: 8, 36>}, {pipeline_mode = #tpu.pipeline_mode<synchronous>, transform_indices = @transform_2, window_bounds = array<i64: 8, 1>}, {transform_indices = @transform_3, window_bounds = array<i64: 1, 8, 128>}]} {
    %c0 = arith.constant 0 : index
    %c0_0 = arith.constant 0 : index
    %0 = vector.load %arg3[%c0, %c0_0] : memref<8x36xf32, #tpu.memory_space<vmem>>, vector<8x36xf32>
    %c0_1 = arith.constant 0 : index
    %c0_2 = arith.constant 0 : index
    %c0_3 = arith.constant 0 : index
    %1 = vector.load %arg2[%c0_1, %c0_2, %c0_3] : memref<1x36x128xf32, #tpu.memory_space<vmem>>, vector<1x36x128xf32>
    %2 = vector.shape_cast %1 : vector<1x36x128xf32> to vector<36x128xf32>
    %cst = arith.constant dense<0.000000e+00> : vector<8x128xf32>
    %3 = tpu.matmul %0, %2, %cst {dimension_numbers = #tpu.dot_dimension_numbers<[1], [0], [0], [1], [0, 0, 1, 1], [], []>} : vector<8x36xf32>, vector<36x128xf32>, vector<8x128xf32> -> vector<8x128xf32>
    %c0_4 = arith.constant 0 : index
    %c0_5 = arith.constant 0 : index
    %4 = vector.load %arg4[%c0_4, %c0_5] : memref<8x1xf32, #tpu.memory_space<vmem>>, vector<8x1xf32>
    %5 = vector.broadcast %4 : vector<8x1xf32> to vector<8x128xf32>
    %6 = arith.addf %3, %5 : vector<8x128xf32>
    %cst_6 = arith.constant 0.000000e+00 : f32
    %7 = vector.broadcast %cst_6 : f32 to vector<8x128xf32>
    %8 = arith.maximumf %6, %7 : vector<8x128xf32>
    %c0_7 = arith.constant 0 : index
    %c0_8 = arith.constant 0 : index
    %c0_9 = arith.constant 0 : index
    %9 = vector.load %arg5[%c0_7, %c0_8, %c0_9] : memref<1x8x128xf32, #tpu.memory_space<vmem>>, vector<1x8x128xf32>
    %10 = vector.shape_cast %9 : vector<1x8x128xf32> to vector<8x128xf32>
    %11 = vector.shape_cast %8 : vector<8x128xf32> to vector<1x8x128xf32>
    tpu.vector_store %arg5[%c0_7, %c0_8, %c0_9], %11 {strides = array<i32>} : memref<1x8x128xf32, #tpu.memory_space<vmem>>, vector<1x8x128xf32>,
    return
  }
  func.func @transform_0(%arg0: i32, %arg1: i32) -> (i32, i32, i32) {
    %c0_i32 = arith.constant 0 : i32
    %c0_i32_0 = arith.constant 0 : i32
    return %arg0, %c0_i32, %arg1 : i32, i32, i32
  }
  func.func @transform_1(%arg0: i32, %arg1: i32) -> (i32, i32) {
    %c0_i32 = arith.constant 0 : i32
    %c0_i32_0 = arith.constant 0 : i32
    %c0_i32_1 = arith.constant 0 : i32
    return %c0_i32, %c0_i32_0 : i32, i32
  }
  func.func @transform_2(%arg0: i32, %arg1: i32) -> (i32, i32) {
    %c0_i32 = arith.constant 0 : i32
    %c0_i32_0 = arith.constant 0 : i32
    %c0_i32_1 = arith.constant 0 : i32
    return %c0_i32, %c0_i32_0 : i32, i32
  }
  func.func @transform_3(%arg0: i32, %arg1: i32) -> (i32, i32, i32) {
    %c0_i32 = arith.constant 0 : i32
    %c0_i32_0 = arith.constant 0 : i32
    return %arg0, %c0_i32, %arg1 : i32, i32, i32
  }
}

</mosaic_0001>

<llo_original>
// kernel: tpu_custom_call.1
$region0: #{tpu_custom_call.1}
  #allocation0 [shape = 'u32[]', space=smem, size = 0x4, offset = 0x4, fixed_abs, tag = 'smem constant byte address 0x4 - core index']
  #allocation1 [shape = 'u32[72,128]{1,0:T(1,128)}', space=vmem, size = 0x9000, scoped, tag = 'internal scratch']
  %s0 = inlined_call_operand.vmem [shape: f32[2,36,256], index: 0, kind: input, shape index: {}]
  %s1 = inlined_call_operand.vmem [shape: f32[8,36], index: 1, kind: input, shape index: {}]
  %s2 = inlined_call_operand.vmem [shape: f32[8,1], index: 2, kind: input, shape index: {}]
  %s3 = inlined_call_operand.hbm [shape: f32[2,8,256], index: 3, kind: output, shape index: {}]
  %s4 = sld [smem:[#allocation0]]
  $region83: #{tpu_custom_call.1} parent=0
    _
  %s6 = ssub.s32 1, %s4
  %s7 = scalar_select 0, %s6, %s4
  $region1: #{tpu_custom_call.1} parent=0
    #allocation2 [shape = 'u8[40960]{0}', space=vmem, size = 0xa000, scoped, tag = 'input window, operand 0']
    #allocation3 [shape = 'u8[8192]{0}', space=vmem, size = 0x2000, scoped, tag = 'output window, operand 0']
    #allocation4 [shape = 's32[2]{0}', space=sflag, size = 0x8, scoped, tag = 'scoped memory for tpu_custom_call.1']
    %8 = vsyncpa [#allocation4], 0
    %s9 = scalar_lea.sflag [#allocation4], 1
    %10 = vsyncpa %s9, 0
    loop: start=0, step=1, limit=6
    $region2: #{tpu_custom_call.1} parent=1 // loop_pre_header
      _
    $region3: #{tpu_custom_call.1} parent=1 // loop_header
      %s12 = sphi 0, %s16
      %p13 = scmp.ge.s32.totalorder %s12, 6
      %s19 = sphi 0, %s31
      %s20 = sphi 0, %s27
      %s21 = sphi 0, %s19
      %s22 = sphi 0, %s20
      %s23 = sphi 0, %s21
      %s24 = sphi 0, %s22
      %s36 = sphi 0, %s38
      %s39 = sphi 0, %s36
      %s40 = sphi 0, %s39
      %s56 = sphi 0, %s40
      %s60 = sphi 0, %s60
      %s62 = sphi 0, %s60
      %s63 = sphi 0, %s62
      %s77 = sphi 0, %s63
      %s81 = sphi 0, %s81
      %s83 = sphi 0, %s81
      %s84 = sphi 0, %s83
      %s98 = sphi 0, %s84
      %s106 = sphi 0, %s108
      %s109 = sphi 0, %s106
      %s110 = sphi 0, %s109
      %s126 = sphi 0, %s110
    $region4: #{tpu_custom_call.1} parent=1 // loop_header_branch
      %15 = sbr.rel (%p13) target = $region8
    $region5: #{tpu_custom_call.1} parent=1 // loop_body
      %s17 = ssub.s32 %s12, 1
      %s18 = ssub.s32 %s12, 2
      %s25 = sadd.s32 1, %s20
      %p26 = scmp.ge.s32.totalorder %s25, 2
      %s27 = scalar_select %p26, 0, %s25
      %s28 = sadd.s32 1, %s19
      %s29 = scalar_select %p26, %s28, %s19
      %p30 = scmp.ge.s32.totalorder %s29, 2
      %s31 = scalar_select %p30, 0, %s29
      %s32 = ssub.s32 %s19, %s31
      %s33 = ssub.s32 %s20, %s27
      %s34 = sor.u32 %s32, %s33
      %p35 = scmp.eq.s32.totalorder %s34, 0
      %s37 = sadd.s32 %s36, 1
      %s38 = scalar_select %p35, %s36, %s37
      %p41 = pneg %p35
      %p42 = scmp.eq.s32.totalorder %s12, 3
      %p43 = por %p41, %p42
      %p44 = scmp.ne.s32.totalorder %s36, %s39
      %p45 = scmp.eq.s32.totalorder %s12, 0
      %p46 = por %p44, %p45
      %p47 = scmp.ne.s32.totalorder %s36, %s39
      %p48 = scmp.eq.s32.totalorder %s17, 3
      %p49 = por %p47, %p48
      %p50 = scmp.ne.s32.totalorder %s39, %s40
      %p51 = scmp.eq.s32.totalorder %s17, 0
      %p52 = por %p50, %p51
      %p53 = scmp.ne.s32.totalorder %s39, %s40
      %p54 = scmp.eq.s32.totalorder %s18, 3
      %p55 = por %p53, %p54
      %p57 = scmp.ne.s32.totalorder %s40, %s56
      %p58 = scmp.eq.s32.totalorder %s18, 0
      %p59 = por %p57, %p58
      %s61 = sadd.s32 %s60, 1
      %p64 = scmp.eq.s32.totalorder %s12, 3
      %p65 = scmp.ne.s32.totalorder %s60, %s62
      %p66 = scmp.eq.s32.totalorder %s12, 0
      %p67 = por %p65, %p66
      %p68 = scmp.ne.s32.totalorder %s60, %s62
      %p69 = scmp.eq.s32.totalorder %s17, 3
      %p70 = por %p68, %p69
      %p71 = scmp.ne.s32.totalorder %s62, %s63
      %p72 = scmp.eq.s32.totalorder %s17, 0
      %p73 = por %p71, %p72
      %p74 = scmp.ne.s32.totalorder %s62, %s63
      %p75 = scmp.eq.s32.totalorder %s18, 3
      %p76 = por %p74, %p75
      %p78 = scmp.ne.s32.totalorder %s63, %s77
      %p79 = scmp.eq.s32.totalorder %s18, 0
      %p80 = por %p78, %p79
      %s82 = sadd.s32 %s81, 1
      %p85 = scmp.eq.s32.totalorder %s12, 3
      %p86 = scmp.ne.s32.totalorder %s81, %s83
      %p87 = scmp.eq.s32.totalorder %s12, 0
      %p88 = por %p86, %p87
      %p89 = scmp.ne.s32.totalorder %s81, %s83
      %p90 = scmp.eq.s32.totalorder %s17, 3
      %p91 = por %p89, %p90
      %p92 = scmp.ne.s32.totalorder %s83, %s84
      %p93 = scmp.eq.s32.totalorder %s17, 0
      %p94 = por %p92, %p93
      %p95 = scmp.ne.s32.totalorder %s83, %s84
      %p96 = scmp.eq.s32.totalorder %s18, 3
      %p97 = por %p95, %p96
      %p99 = scmp.ne.s32.totalorder %s84, %s98
      %p100 = scmp.eq.s32.totalorder %s18, 0
      %p101 = por %p99, %p100
      %s102 = ssub.s32 %s19, %s31
      %s103 = ssub.s32 %s20, %s27
      %s104 = sor.u32 %s102, %s103
      %p105 = scmp.eq.s32.totalorder %s104, 0
      %s107 = sadd.s32 %s106, 1
      %s108 = scalar_select %p105, %s106, %s107
      %p111 = pneg %p105
      %p112 = scmp.eq.s32.totalorder %s12, 3
      %p113 = por %p111, %p112
      %p114 = scmp.ne.s32.totalorder %s106, %s109
      %p115 = scmp.eq.s32.totalorder %s12, 0
      %p116 = por %p114, %p115
      %p117 = scmp.ne.s32.totalorder %s106, %s109
      %p118 = scmp.eq.s32.totalorder %s17, 3
      %p119 = por %p117, %p118
      %p120 = scmp.ne.s32.totalorder %s109, %s110
      %p121 = scmp.eq.s32.totalorder %s17, 0
      %p122 = por %p120, %p121
      %p123 = scmp.ne.s32.totalorder %s109, %s110
      %p124 = scmp.eq.s32.totalorder %s18, 3
      %p125 = por %p123, %p124
      %p127 = scmp.ne.s32.totalorder %s110, %s126
      %p128 = scmp.eq.s32.totalorder %s18, 0
      %p129 = por %p127, %p128
      %p130 = scmp.le.s32.totalorder 1, %s12
      %p131 = scmp.lt.s32.totalorder %s12, 5
      %p132 = pnand %p130, %p131
      %p133 = pneg %p132
      // Predicated region
      $region9: #{tpu_custom_call.1} parent=5 // pred_check
        _
      $region10: #{tpu_custom_call.1} parent=5 // pred_check_branch
        %135 = sbr.rel (%p132) target = $region12
      $region11: #{tpu_custom_call.1} parent=5 // pred_region
        %s136 = ssub.s32 %s12, 1
        // Predicated region
        $region13: #{tpu_custom_call.1} parent=11 // pred_check
          %p137 = pneg %p73
        $region14: #{tpu_custom_call.1} parent=11 // pred_check_branch
          %139 = sbr.rel (%p137) target = $region16
        $region15: #{tpu_custom_call.1} parent=11 // pred_region
          _
        $region16: #{tpu_custom_call.1} parent=11 // pred_fallthru
          _
        // Predicated region
        $region17: #{tpu_custom_call.1} parent=11 // pred_check
          %p140 = pneg %p94
        $region18: #{tpu_custom_call.1} parent=11 // pred_check_branch
          %142 = sbr.rel (%p140) target = $region20
        $region19: #{tpu_custom_call.1} parent=11 // pred_region
          _
        $region20: #{tpu_custom_call.1} parent=11 // pred_fallthru
          _
      $region12: #{tpu_custom_call.1} parent=5 // pred_fallthru
        _
      %p143 = scmp.lt.s32.totalorder %s12, 4
      // Predicated region
      $region21: #{tpu_custom_call.1} parent=5 // pred_check
        %p144 = pneg %p143
      $region22: #{tpu_custom_call.1} parent=5 // pred_check_branch
        %146 = sbr.rel (%p144) target = $region24
      $region23: #{tpu_custom_call.1} parent=5 // pred_region
        // Predicated region
        $region25: #{tpu_custom_call.1} parent=23 // pred_check
          %p147 = pneg %p46
        $region26: #{tpu_custom_call.1} parent=23 // pred_check_branch
          %149 = sbr.rel (%p147) target = $region28
        $region27: #{tpu_custom_call.1} parent=23 // pred_region
          %s150 = sand.u32 %s36, 1
          %s151 = sand.u32 %s36, 1
          %s152 = smul.addr %s151, 40
          %s153 = scalar_lea.vmem [#allocation2], %s152
          %s154 = smul.addr %s19, 10
          %s155 = sadd.s32 %s20, %s154
          %s156 = smul.addr %s155, 8
          %s157 = scalar_lea.vmem %s0, %s156
          // Predicated region
          $region29: #{tpu_custom_call.1} parent=27 // pred_check
            _
          $region30: #{tpu_custom_call.1} parent=27 // pred_check_branch
            %159 = sbr.rel (0) target = $region32
          $region31: #{tpu_custom_call.1} parent=27 // pred_region
            // Predicated region
            $region33: #{tpu_custom_call.1} parent=31 // pred_check
              _
            $region34: #{tpu_custom_call.1} parent=31 // pred_check_branch
              %161 = sbr.rel (0) target = $region36
            $region35: #{tpu_custom_call.1} parent=31 // pred_region
              // Predicated region
              $region48: #{tpu_custom_call.1} parent=35 // pred_check
                _
              $region49: #{tpu_custom_call.1} parent=35 // pred_check_branch
                %185 = sbr.rel (0) target = $region51
              $region50: #{tpu_custom_call.1} parent=35 // pred_region
                loop: start=0, step=1, limit=1
                $region52: #{tpu_custom_call.1} parent=50 // loop_pre_header
                  _
                $region53: #{tpu_custom_call.1} parent=50 // loop_header
                  %s187 = sphi 0, %s191
                  %p188 = scmp.ge.s32.totalorder %s187, 1
                  %s192 = sphi %s157, %s157
                  %s193 = sphi %s153, %s153
                $region54: #{tpu_custom_call.1} parent=50 // loop_header_branch
                  %190 = sbr.rel (%p188) target = $region58
                $region55: #{tpu_custom_call.1} parent=50 // loop_body
                  %v194 = vld [vmem:[%s192] sm:$0xff]
                  %195 = vst [vmem:[%s193] sm:$0xff] %v194
                  %v196 = vld [vmem:[%s192 + $0x10] sm:$0xff]
                  %197 = vst [vmem:[%s193 + $0x8] sm:$0xff] %v196
                  %v198 = vld [vmem:[%s192 + $0x20] sm:$0xff]
                  %199 = vst [vmem:[%s193 + $0x10] sm:$0xff] %v198
                  %v200 = vld [vmem:[%s192 + $0x30] sm:$0xff]
                  %201 = vst [vmem:[%s193 + $0x18] sm:$0xff] %v200
                  %v202 = vld [vmem:[%s192 + $0x40] sm:$0xff]
                  %203 = vst [vmem:[%s193 + $0x20] sm:$0xff] %v202
                $region56: #{tpu_custom_call.1} parent=50 // loop_footer
                  %s191 = sadd.s32 1, %s187
                $region57: #{tpu_custom_call.1} parent=50 // loop_footer_branch
                  %186 = sbr.rel target = $region53
                $region58: #{tpu_custom_call.1} parent=50 // loop_exit
                  _
              $region51: #{tpu_custom_call.1} parent=35 // pred_fallthru
                _
              // Predicated region
              $region59: #{tpu_custom_call.1} parent=35 // pred_check
                _
              $region60: #{tpu_custom_call.1} parent=35 // pred_check_branch
                %205 = sbr.rel target = $region62
              $region61: #{tpu_custom_call.1} parent=35 // pred_region
                _
              $region62: #{tpu_custom_call.1} parent=35 // pred_fallthru
                _
            $region36: #{tpu_custom_call.1} parent=31 // pred_fallthru
              _
            // Predicated region
            $region37: #{tpu_custom_call.1} parent=31 // pred_check
              _
            $region38: #{tpu_custom_call.1} parent=31 // pred_check_branch
              %163 = sbr.rel target = $region40
            $region39: #{tpu_custom_call.1} parent=31 // pred_region
              %s165 = ssub.s32 256, 1
              loop: start=0, step=1, limit=1
              $region41: #{tpu_custom_call.1} parent=39 // loop_pre_header
                _
              $region42: #{tpu_custom_call.1} parent=39 // loop_header
                %s167 = sphi 0, %s171
                %p168 = scmp.ge.s32.totalorder %s167, 1
                %s172 = sphi %s157, %s157
                %s173 = sphi %s153, %s153
              $region43: #{tpu_custom_call.1} parent=39 // loop_header_branch
                %170 = sbr.rel (%p168) target = $region47
              $region44: #{tpu_custom_call.1} parent=39 // loop_body
                %v174 = vld [vmem:[%s172] sm:%s165]
                %175 = vst [vmem:[%s173] sm:%s165] %v174
                %v176 = vld [vmem:[%s172 + $0x10] sm:%s165]
                %177 = vst [vmem:[%s173 + $0x8] sm:%s165] %v176
                %v178 = vld [vmem:[%s172 + $0x20] sm:%s165]
                %179 = vst [vmem:[%s173 + $0x10] sm:%s165] %v178
                %v180 = vld [vmem:[%s172 + $0x30] sm:%s165]
                %181 = vst [vmem:[%s173 + $0x18] sm:%s165] %v180
                %v182 = vld [vmem:[%s172 + $0x40] sm:%s165]
                %183 = vst [vmem:[%s173 + $0x20] sm:%s165] %v182
              $region45: #{tpu_custom_call.1} parent=39 // loop_footer
                %s171 = sadd.s32 1, %s167
              $region46: #{tpu_custom_call.1} parent=39 // loop_footer_branch
                %166 = sbr.rel target = $region42
              $region47: #{tpu_custom_call.1} parent=39 // loop_exit
                _
            $region40: #{tpu_custom_call.1} parent=31 // pred_fallthru
              _
          $region32: #{tpu_custom_call.1} parent=27 // pred_fallthru
            _
          %206 = vnop
        $region28: #{tpu_custom_call.1} parent=23 // pred_fallthru
          _
      $region24: #{tpu_custom_call.1} parent=5 // pred_fallthru
        _
      %p207 = scmp.le.s32.totalorder 1, %s12
      %p208 = scmp.lt.s32.totalorder %s12, 5
      %p209 = pnand %p207, %p208
      %p210 = pneg %p209
      // Predicated region
      $region63: #{tpu_custom_call.1} parent=5 // pred_check
        _
      $region64: #{tpu_custom_call.1} parent=5 // pred_check_branch
        %212 = sbr.rel (%p209) target = $region66
      $region65: #{tpu_custom_call.1} parent=5 // pred_region
        %s213 = ssub.s32 %s12, 1
        %s214 = sand.u32 %s39, 1
        %s215 = sand.u32 %s39, 1
        %s216 = smul.addr %s215, 40
        %s217 = scalar_lea.vmem [#allocation2], %s216
        // Predicated region
        $region67: #{tpu_custom_call.1} parent=65 // pred_check
          %p218 = pneg %p52
        $region68: #{tpu_custom_call.1} parent=65 // pred_check_branch
          %220 = sbr.rel (%p218) target = $region70
        $region69: #{tpu_custom_call.1} parent=65 // pred_region
          _
        $region70: #{tpu_custom_call.1} parent=65 // pred_fallthru
          _
        %s221 = sand.u32 %s39, 1
        %s222 = sand.u32 %s39, 1
        %s223 = smul.addr %s222, 40
        %s224 = scalar_lea.vmem [#allocation2], %s223
        %p225 = pneg %p52
        %p226 = pneg %p49
        %p227 = pneg %p73
        %p228 = pneg %p70
        %p229 = pneg %p94
        %p230 = pneg %p91
        %p231 = pneg %p122
        %p232 = pneg %p119
        %s233 = sand.u32 %s109, 1
        %s234 = scalar_lea.sflag [#allocation4], %s233
        %s235 = sand.u32 %s109, 1
        %s236 = smul.addr %s235, 8
        %s237 = scalar_lea.vmem [#allocation3], %s236
        %v238 = vld [vmem:[%s1] sm:$0xff]
        %v239 = vld [vmem:[%s217] sm:$0xff]
        %v240 = vld [vmem:[%s217 + $0x8] sm:$0xff]
        %v241 = vld [vmem:[%s217 + $0x10] sm:$0xff]
        %v242 = vld [vmem:[%s217 + $0x18] sm:$0xff]
        %v243 = vld [vmem:[%s217 + $0x20] sm:$0xf]
        %v244 = vld [vmem:[%s2] sm:$0xff]
        %246 = vset.pattern.permute.xlu0 0
        %247 = vperm.xlu0 %246, %v244
        %v248 = vpop.permute.xlu0 %247
        %vm250 = vcmask 293888
        %v252 = vsel %vm250, %v238, 0
        %vm254 = vcmask 1043456
        %v256 = vsel %vm254, %v243, 0
        %258 = vmatpush.msra.mxu0 0.0
        %259 = vmatpush.msra.mxu0 0.0
        %260 = vmatpush.msra.mxu0 0.0
        %261 = vmatpush.msra.mxu0 0.0
        %262 = vmatpush.msra.mxu0 0.0
        %263 = vmatpush.msra.mxu0 0.0
        %264 = vmatpush.msra.mxu0 0.0
        %265 = vmatpush.msra.mxu0 0.0
        %266 = vmatpush.msra.mxu0 0.0
        %267 = vmatpush.msra.mxu0 0.0
        %268 = vmatpush.msra.mxu0 0.0
        %269 = vmatpush.msra.mxu0 %v256
        %270 = vmatpush.msra.mxu0 %v242
        %271 = vmatpush.msra.mxu0 %v241
        %272 = vmatpush.msra.mxu0 %v240
        %273 = vmatpush.msra.mxu0 %v239
        %274 = vmatmul.f32.gmra.mxu0 %v252
        %v275 = vpop.f32.mrf.mxu0
        %v276 = vadd.f32 %v248, %v275
        %277 = vdwg.mxu0
        %v278 = vmax.f32 %v276, 0.0
        %279 = vst [vmem:[%s237] sm:$0xff] %v278
        %s280 = sand.u32 %s109, 1
        %s281 = scalar_lea.sflag [#allocation4], %s280
        %s282 = sand.u32 %s109, 1
        %s283 = smul.addr %s282, 8
        %s284 = scalar_lea.vmem [#allocation3], %s283
        // Predicated region
        $region71: #{tpu_custom_call.1} parent=65 // pred_check
          %p285 = pneg %p119
        $region72: #{tpu_custom_call.1} parent=65 // pred_check_branch
          %287 = sbr.rel (%p285) target = $region74
        $region73: #{tpu_custom_call.1} parent=65 // pred_region
          %289 = vsyncadd %s281, 0
          %s290 = smul.addr %s21, 2
          %s291 = sadd.s32 %s22, %s290
          %s292 = smul.addr %s291, 8
          %s293 = scalar_lea.hbm %s3, %s292
          %s295 = sshll.u32 %s284, 4
          %s296 = int_to_ptr.vmem [resolvable:$true] %s295
          %s297 = sshll.u32 %s293, 4
          %s298 = int_to_ptr.hbm [resolvable:$true] %s297
          %300 = dma.vmem_to_hbm [thread:$0]  %s296, 128, %s298, %s281
        $region74: #{tpu_custom_call.1} parent=65 // pred_fallthru
          _
      $region66: #{tpu_custom_call.1} parent=5 // pred_fallthru
        _
      %p301 = scmp.le.s32.totalorder 2, %s12
      // Predicated region
      $region75: #{tpu_custom_call.1} parent=5 // pred_check
        %p302 = pneg %p301
      $region76: #{tpu_custom_call.1} parent=5 // pred_check_branch
        %304 = sbr.rel (%p302) target = $region78
      $region77: #{tpu_custom_call.1} parent=5 // pred_region
        %s305 = ssub.s32 %s12, 2
        // Predicated region
        $region79: #{tpu_custom_call.1} parent=77 // pred_check
          %p306 = pneg %p125
        $region80: #{tpu_custom_call.1} parent=77 // pred_check_branch
          %308 = sbr.rel (%p306) target = $region82
        $region81: #{tpu_custom_call.1} parent=77 // pred_region
          %s309 = sand.u32 %s110, 1
          %s310 = scalar_lea.sflag [#allocation4], %s309
          %s311 = sand.u32 %s110, 1
          %s312 = smul.addr %s311, 8
          %s313 = scalar_lea.vmem [#allocation3], %s312
          %315 = dma.done %s310, 128
        $region82: #{tpu_custom_call.1} parent=77 // pred_fallthru
          _
      $region78: #{tpu_custom_call.1} parent=5 // pred_fallthru
        _
    $region6: #{tpu_custom_call.1} parent=1 // loop_footer
      %s16 = sadd.s32 1, %s12
    $region7: #{tpu_custom_call.1} parent=1 // loop_footer_branch
      %11 = sbr.rel target = $region3
    $region8: #{tpu_custom_call.1} parent=1 // loop_exit
      _
    %316 = vsyncpa [#allocation4], 1
    %s317 = scalar_lea.sflag [#allocation4], 1
    %318 = vsyncpa %s317, 1

</llo_original>
